<compile_context>
chip_gen: v5e
topology: v5e:2x2
jax: 0.10.0
libtpu: 0.0.40
codegen_flags: <defaults>
</compile_context>

<pallas_src>
import functools

import jax
import jax.numpy as jnp
from jax.experimental import pallas as pl
from jax.experimental.pallas import tpu as pltpu

HIDDEN = 128


def _round_up(x, m):
    return ((x + m - 1) // m) * m


def _const2(*_):
    return (0, 0)


def _mlp_values(x, w1, b1, w2, b2, w3, b3):
    """3-layer MLP on already-loaded VMEM values (all f32, MXU matmuls)."""
    h = jnp.dot(x, w1, preferred_element_type=jnp.float32)
    h = jnp.maximum(h + b1, 0.0)
    h = jnp.dot(h, w2, preferred_element_type=jnp.float32)
    h = jnp.maximum(h + b2, 0.0)
    z = jnp.dot(h, w3, preferred_element_type=jnp.float32)
    return z + b3


# ------------------- fused MLP + softmax (single-tile batch) -----------------

def _fused_actor_kernel(n_valid, axis,
                        x_ref, w1_ref, b1_ref, w2_ref, b2_ref, w3_ref, b3_ref,
                        o_ref):
    z = _mlp_values(x_ref[...], w1_ref[...], b1_ref[...], w2_ref[...],
                    b2_ref[...], w3_ref[...], b3_ref[...])
    if axis == 0:
        # Softmax over the batch axis: padded rows must not touch the stats.
        rows = jax.lax.broadcasted_iota(jnp.int32, z.shape, 0)
        z = jnp.where(rows < n_valid, z, -jnp.inf)
    m = jnp.max(z, axis=axis, keepdims=True)
    e = jnp.exp(z - m)
    s = jnp.sum(e, axis=axis, keepdims=True)
    o_ref[...] = e / s


def _fused_forward(x2, params, n_valid, axis):
    w1, b1, w2, b2, w3, b3 = params
    Bp, D = x2.shape
    H = w1.shape[1]
    A = w3.shape[1]

    flops = 2 * Bp * (D * H + H * H + H * A) + 6 * Bp * A
    bytes_accessed = 4 * (Bp * D + D * H + H * H + H * A + 3 * H + A + Bp * A)

    return pl.pallas_call(
        functools.partial(_fused_actor_kernel, n_valid, axis),
        out_shape=jax.ShapeDtypeStruct((Bp, A), jnp.float32),
        grid_spec=pltpu.PrefetchScalarGridSpec(
            num_scalar_prefetch=0,
            grid=(1,),
            in_specs=[
                pl.BlockSpec((Bp, D), _const2),
                pl.BlockSpec((D, H), _const2),
                pl.BlockSpec((1, H), _const2),
                pl.BlockSpec((H, H), _const2),
                pl.BlockSpec((1, H), _const2),
                pl.BlockSpec((H, A), _const2),
                pl.BlockSpec((1, A), _const2),
            ],
            out_specs=pl.BlockSpec((Bp, A), _const2),
        ),
        compiler_params=pltpu.CompilerParams(
            dimension_semantics=("arbitrary",)),
        cost_estimate=pl.CostEstimate(
            flops=flops, transcendentals=Bp * A, bytes_accessed=bytes_accessed),
    )(x2, w1, b1, w2, b2, w3, b3)


# ------------- pass 1: fused MLP + softmax(dim=0) statistics -----------------

def _mlp_stats_kernel(n_valid, tile_b,
                      x_ref, w1_ref, b1_ref, w2_ref, b2_ref, w3_ref, b3_ref,
                      z_ref, m_ref, l_ref):
    j = pl.program_id(0)
    z = _mlp_values(x_ref[...], w1_ref[...], b1_ref[...], w2_ref[...],
                    b2_ref[...], w3_ref[...], b3_ref[...])
    z_ref[...] = z

    # Online per-column (dim=0) max / sum-of-exp, masking padded batch rows.
    rows = j * tile_b + jax.lax.broadcasted_iota(jnp.int32, z.shape, 0)
    zm = jnp.where(rows < n_valid, z, -jnp.inf)

    @pl.when(j == 0)
    def _init():
        m_ref[...] = jnp.full(m_ref.shape, -jnp.inf, jnp.float32)
        l_ref[...] = jnp.zeros(l_ref.shape, jnp.float32)

    m_old = m_ref[...]
    m_new = jnp.maximum(m_old, jnp.max(zm, axis=0, keepdims=True))
    l_ref[...] = (l_ref[...] * jnp.exp(m_old - m_new)
                  + jnp.sum(jnp.exp(zm - m_new), axis=0, keepdims=True))
    m_ref[...] = m_new


def _mlp_stats(x2, params, n_valid, tile_b):
    w1, b1, w2, b2, w3, b3 = params
    Bp, D = x2.shape
    H = w1.shape[1]
    A = w3.shape[1]
    nb = Bp // tile_b

    flops = 2 * Bp * (D * H + H * H + H * A) + 6 * Bp * A
    bytes_accessed = 4 * (Bp * D + D * H + H * H + H * A + 3 * H + A
                          + Bp * A + 2 * A)

    return pl.pallas_call(
        functools.partial(_mlp_stats_kernel, n_valid, tile_b),
        out_shape=(jax.ShapeDtypeStruct((Bp, A), jnp.float32),   # logits
                   jax.ShapeDtypeStruct((1, A), jnp.float32),    # column max
                   jax.ShapeDtypeStruct((1, A), jnp.float32)),   # column sum-exp
        grid_spec=pltpu.PrefetchScalarGridSpec(
            num_scalar_prefetch=0,
            grid=(nb,),
            in_specs=[
                pl.BlockSpec((tile_b, D), lambda j: (j, 0)),   # x: batch tiled
                pl.BlockSpec((D, H), _const2),                 # weights resident
                pl.BlockSpec((1, H), _const2),
                pl.BlockSpec((H, H), _const2),
                pl.BlockSpec((1, H), _const2),
                pl.BlockSpec((H, A), _const2),
                pl.BlockSpec((1, A), _const2),
            ],
            out_specs=(
                pl.BlockSpec((tile_b, A), lambda j: (j, 0)),
                pl.BlockSpec((1, A), _const2),                 # resident accumulators
                pl.BlockSpec((1, A), _const2),
            ),
        ),
        compiler_params=pltpu.CompilerParams(
            dimension_semantics=("arbitrary",)),               # cross-tile accumulation
        cost_estimate=pl.CostEstimate(
            flops=flops, transcendentals=Bp * A, bytes_accessed=bytes_accessed),
    )(x2, w1, b1, w2, b2, w3, b3)


# ----------------------- pass 2: softmax normalization -----------------------

def _normalize_kernel(z_ref, m_ref, l_ref, o_ref):
    o_ref[...] = jnp.exp(z_ref[...] - m_ref[...]) / l_ref[...]


def _normalize(z, m, l, tile_b):
    Bp, A = z.shape
    nb = Bp // tile_b
    return pl.pallas_call(
        _normalize_kernel,
        out_shape=jax.ShapeDtypeStruct((Bp, A), jnp.float32),
        grid_spec=pltpu.PrefetchScalarGridSpec(
            num_scalar_prefetch=0,
            grid=(nb,),
            in_specs=[
                pl.BlockSpec((tile_b, A), lambda j: (j, 0)),
                pl.BlockSpec((1, A), _const2),
                pl.BlockSpec((1, A), _const2),
            ],
            out_specs=pl.BlockSpec((tile_b, A), lambda j: (j, 0)),
        ),
        compiler_params=pltpu.CompilerParams(
            dimension_semantics=("parallel",)),
        cost_estimate=pl.CostEstimate(
            flops=2 * Bp * A, transcendentals=Bp * A,
            bytes_accessed=4 * (2 * Bp * A + 2 * A)),
    )(z, m, l)


# ------------------------------- wrapper ------------------------------------

def actor_forward(x, params, *, tile_b=2048):
    """Pallas forward pass matching Actor.forward.

    x: [B, D] (Softmax(dim=0) normalizes over the batch axis, exactly like the
       PyTorch module for 2-D activations) or [D] (single state: softmax over
       the action axis).
    """
    w1, b1, w2, b2, w3, b3 = params
    single = (x.ndim == 1)
    x2 = x[None, :] if single else x
    B, _ = x2.shape

    # Pad the batch to a tile multiple so every block is (8, 128)-legal.
    tb = min(tile_b, _round_up(B, 8))
    Bp = _round_up(B, tb)
    if Bp != B:
        x2 = jnp.pad(x2, ((0, Bp - B), (0, 0)))
    nb = Bp // tb

    axis = 1 if single else 0
    if nb == 1:
        # Whole (padded) batch fits one tile: single fully fused kernel.
        y = _fused_forward(x2, params, B, axis)[:B]
    else:
        # Large batch: fused MLP+stats pass, then a normalize pass.
        z, m, l = _mlp_stats(x2, params, B, tb)
        y = _normalize(z, m, l, tb)[:B]

    return y[0] if single else y


# -------------------------- params + reference ------------------------------

def init_params(key, input_dims, output_dims, hidden=HIDDEN):
    """Mimics nn.Linear default init (uniform +-1/sqrt(fan_in)), pre-transposed."""
    ks = jax.random.split(key, 6)

    def linear(kw, kb, fan_in, fan_out):
        bound = 1.0 / jnp.sqrt(jnp.float32(fan_in))
        w = jax.random.uniform(kw, (fan_in, fan_out), jnp.float32, -bound, bound)
        b = jax.random.uniform(kb, (1, fan_out), jnp.float32, -bound, bound)
        return w, b

    w1, b1 = linear(ks[0], ks[1], input_dims, hidden)
    w2, b2 = linear(ks[2], ks[3], hidden, hidden)
    w3, b3 = linear(ks[4], ks[5], hidden, output_dims)
    return w1, b1, w2, b2, w3, b3


def actor_reference(x, params):
    """Pure-JAX reference with the same math as the PyTorch module."""
    w1, b1, w2, b2, w3, b3 = params
    hp = jax.lax.Precision.HIGHEST
    x2 = x[None, :] if x.ndim == 1 else x
    h = jnp.maximum(jnp.dot(x2, w1, precision=hp) + b1, 0.0)
    h = jnp.maximum(jnp.dot(h, w2, precision=hp) + b2, 0.0)
    z = jnp.dot(h, w3, precision=hp) + b3
    if x.ndim == 1:
        return jax.nn.softmax(z[0], axis=0)     # softmax over actions
    return jax.nn.softmax(z, axis=0)            # softmax over the batch axis


if __name__ == "__main__":
    key = jax.random.PRNGKey(0)
    k_x, k_x1, k_x2, k_p = jax.random.split(key, 4)

    B, input_dims, output_dims = 8, 32, 4
    params = init_params(k_p, input_dims, output_dims)

    # 1) Batched states (single tile, fully fused path): Softmax(dim=0) over batch.
    x = jax.random.normal(k_x, (B, input_dims), jnp.float32)
    y = jax.block_until_ready(actor_forward(x, params))
    y_ref = actor_reference(x, params)
    assert y.shape == (B, output_dims)
    assert jnp.allclose(y, y_ref, atol=1e-4, rtol=1e-4), float(jnp.max(jnp.abs(y - y_ref)))
    assert jnp.allclose(jnp.sum(y, axis=0), jnp.ones((output_dims,), jnp.float32), atol=1e-5)

    # 2) Canonical single-state usage: [D] -> [A]; softmax over actions.
    x1 = jax.random.normal(k_x1, (input_dims,), jnp.float32)
    y1 = jax.block_until_ready(actor_forward(x1, params))
    y1_ref = actor_reference(x1, params)
    assert y1.shape == (output_dims,)
    assert jnp.allclose(y1, y1_ref, atol=1e-4, rtol=1e-4), float(jnp.max(jnp.abs(y1 - y1_ref)))
    assert jnp.allclose(jnp.sum(y1), 1.0, atol=1e-5)

    # 3) Multi-tile batch (exercises the two-pass MLP+stats / normalize path).
    B2 = 20
    x_big = jax.random.normal(k_x2, (B2, input_dims), jnp.float32)
    y2 = jax.block_until_ready(actor_forward(x_big, params, tile_b=8))
    y2_ref = actor_reference(x_big, params)
    assert y2.shape == (B2, output_dims)
    assert jnp.allclose(y2, y2_ref, atol=1e-4, rtol=1e-4), float(jnp.max(jnp.abs(y2 - y2_ref)))
    assert jnp.allclose(jnp.sum(y2, axis=0), jnp.ones((output_dims,), jnp.float32), atol=1e-5)

    print("KERNEL_OK")
</pallas_src>

<mosaic_0001>
module attributes {stable_mosaic.version = 11 : i64} {
  func.func @_fused_actor_kernel(%arg0: i32, %arg1: memref<8x32xf32, #tpu.memory_space<vmem>>, %arg2: memref<32x128xf32, #tpu.memory_space<vmem>>, %arg3: memref<1x128xf32, #tpu.memory_space<vmem>>, %arg4: memref<128x128xf32, #tpu.memory_space<vmem>>, %arg5: memref<1x128xf32, #tpu.memory_space<vmem>>, %arg6: memref<128x4xf32, #tpu.memory_space<vmem>>, %arg7: memref<1x4xf32, #tpu.memory_space<vmem>>, %arg8: memref<8x4xf32, #tpu.memory_space<vmem>>) attributes {dimension_semantics = [#tpu.dimension_semantics<arbitrary>], iteration_bounds = array<i64: 1>, scalar_prefetch = 0 : i64, scratch_operands = 0 : i64, tpu.core_type = #tpu.core_type<tc>, window_params = [{pipeline_mode = #tpu.pipeline_mode<synchronous>, transform_indices = @transform_0, window_bounds = array<i64: 8, 32>}, {pipeline_mode = #tpu.pipeline_mode<synchronous>, transform_indices = @transform_1, window_bounds = array<i64: 32, 128>}, {pipeline_mode = #tpu.pipeline_mode<synchronous>, transform_indices = @transform_2, window_bounds = array<i64: 1, 128>}, {pipeline_mode = #tpu.pipeline_mode<synchronous>, transform_indices = @transform_3, window_bounds = array<i64: 128, 128>}, {pipeline_mode = #tpu.pipeline_mode<synchronous>, transform_indices = @transform_4, window_bounds = array<i64: 1, 128>}, {pipeline_mode = #tpu.pipeline_mode<synchronous>, transform_indices = @transform_5, window_bounds = array<i64: 128, 4>}, {pipeline_mode = #tpu.pipeline_mode<synchronous>, transform_indices = @transform_6, window_bounds = array<i64: 1, 4>}, {pipeline_mode = #tpu.pipeline_mode<synchronous>, transform_indices = @transform_7, window_bounds = array<i64: 8, 4>}]} {
    %c0 = arith.constant 0 : index
    %c0_0 = arith.constant 0 : index
    %0 = vector.load %arg1[%c0, %c0_0] : memref<8x32xf32, #tpu.memory_space<vmem>>, vector<8x32xf32>
    %c0_1 = arith.constant 0 : index
    %c0_2 = arith.constant 0 : index
    %1 = vector.load %arg2[%c0_1, %c0_2] : memref<32x128xf32, #tpu.memory_space<vmem>>, vector<32x128xf32>
    %c0_3 = arith.constant 0 : index
    %c0_4 = arith.constant 0 : index
    %2 = vector.load %arg3[%c0_3, %c0_4] : memref<1x128xf32, #tpu.memory_space<vmem>>, vector<1x128xf32>
    %c0_5 = arith.constant 0 : index
    %c0_6 = arith.constant 0 : index
    %3 = vector.load %arg4[%c0_5, %c0_6] : memref<128x128xf32, #tpu.memory_space<vmem>>, vector<128x128xf32>
    %c0_7 = arith.constant 0 : index
    %c0_8 = arith.constant 0 : index
    %4 = vector.load %arg5[%c0_7, %c0_8] : memref<1x128xf32, #tpu.memory_space<vmem>>, vector<1x128xf32>
    %c0_9 = arith.constant 0 : index
    %c0_10 = arith.constant 0 : index
    %5 = vector.load %arg6[%c0_9, %c0_10] : memref<128x4xf32, #tpu.memory_space<vmem>>, vector<128x4xf32>
    %c0_11 = arith.constant 0 : index
    %c0_12 = arith.constant 0 : index
    %6 = vector.load %arg7[%c0_11, %c0_12] : memref<1x4xf32, #tpu.memory_space<vmem>>, vector<1x4xf32>
    %cst = arith.constant dense<0.000000e+00> : vector<8x128xf32>
    %7 = tpu.matmul %0, %1, %cst {dimension_numbers = #tpu.dot_dimension_numbers<[1], [0], [0], [1], [0, 0, 1, 1], [], []>} : vector<8x32xf32>, vector<32x128xf32>, vector<8x128xf32> -> vector<8x128xf32>
    %8 = vector.broadcast %2 : vector<1x128xf32> to vector<8x128xf32>
    %9 = arith.addf %7, %8 : vector<8x128xf32>
    %cst_13 = arith.constant 0.000000e+00 : f32
    %10 = vector.broadcast %cst_13 : f32 to vector<8x128xf32>
    %11 = arith.maximumf %9, %10 : vector<8x128xf32>
    %cst_14 = arith.constant dense<0.000000e+00> : vector<8x128xf32>
    %12 = tpu.matmul %11, %3, %cst_14 {dimension_numbers = #tpu.dot_dimension_numbers<[1], [0], [0], [1], [0, 0, 1, 1], [], []>} : vector<8x128xf32>, vector<128x128xf32>, vector<8x128xf32> -> vector<8x128xf32>
    %13 = vector.broadcast %4 : vector<1x128xf32> to vector<8x128xf32>
    %14 = arith.addf %12, %13 : vector<8x128xf32>
    %cst_15 = arith.constant 0.000000e+00 : f32
    %15 = vector.broadcast %cst_15 : f32 to vector<8x128xf32>
    %16 = arith.maximumf %14, %15 : vector<8x128xf32>
    %cst_16 = arith.constant dense<0.000000e+00> : vector<8x4xf32>
    %17 = tpu.matmul %16, %5, %cst_16 {dimension_numbers = #tpu.dot_dimension_numbers<[1], [0], [0], [1], [0, 0, 1, 1], [], []>} : vector<8x128xf32>, vector<128x4xf32>, vector<8x4xf32> -> vector<8x4xf32>
    %18 = vector.broadcast %6 : vector<1x4xf32> to vector<8x4xf32>
    %19 = arith.addf %17, %18 : vector<8x4xf32>
    %20 = tpu.iota {dimensions = array<i32: 0>} : vector<8x4xi32>
    %c8_i32 = arith.constant 8 : i32
    %21 = vector.broadcast %c8_i32 : i32 to vector<8x4xi32>
    %22 = arith.cmpi slt, %20, %21 : vector<8x4xi32>
    %cst_17 = arith.constant 0xFF800000 : f32
    %23 = vector.broadcast %cst_17 : f32 to vector<8x4xf32>
    %24 = arith.select %22, %19, %23 : vector<8x4xi1>, vector<8x4xf32>
    %cst_18 = arith.constant dense<0xFF800000> : vector<4xf32>
    %25 = vector.multi_reduction <maximumf>, %24, %cst_18 [0] : vector<8x4xf32> to vector<4xf32>
    %26 = vector.shape_cast %25 : vector<4xf32> to vector<1x4xf32>
    %27 = vector.broadcast %26 : vector<1x4xf32> to vector<8x4xf32>
    %28 = arith.subf %24, %27 : vector<8x4xf32>
    %29 = math.exp %28 : vector<8x4xf32>
    %cst_19 = arith.constant dense<0.000000e+00> : vector<4xf32>
    %30 = vector.multi_reduction <add>, %29, %cst_19 [0] : vector<8x4xf32> to vector<4xf32>
    %31 = vector.shape_cast %30 : vector<4xf32> to vector<1x4xf32>
    %32 = vector.broadcast %31 : vector<1x4xf32> to vector<8x4xf32>
    %33 = arith.divf %29, %32 : vector<8x4xf32>
    %c0_20 = arith.constant 0 : index
    %c0_21 = arith.constant 0 : index
    %34 = vector.load %arg8[%c0_20, %c0_21] : memref<8x4xf32, #tpu.memory_space<vmem>>, vector<8x4xf32>
    tpu.vector_store %arg8[%c0_20, %c0_21], %33 {strides = array<i32>} : memref<8x4xf32, #tpu.memory_space<vmem>>, vector<8x4xf32>,
    return
  }
  func.func @transform_0(%arg0: i32) -> (i32, i32) {
    %c0_i32 = arith.constant 0 : i32
    %c0_i32_0 = arith.constant 0 : i32
    %c0_i32_1 = arith.constant 0 : i32
    return %c0_i32, %c0_i32_0 : i32, i32
  }
  func.func @transform_1(%arg0: i32) -> (i32, i32) {
    %c0_i32 = arith.constant 0 : i32
    %c0_i32_0 = arith.constant 0 : i32
    %c0_i32_1 = arith.constant 0 : i32
    return %c0_i32, %c0_i32_0 : i32, i32
  }
  func.func @transform_2(%arg0: i32) -> (i32, i32) {
    %c0_i32 = arith.constant 0 : i32
    %c0_i32_0 = arith.constant 0 : i32
    %c0_i32_1 = arith.constant 0 : i32
    return %c0_i32, %c0_i32_0 : i32, i32
  }
  func.func @transform_3(%arg0: i32) -> (i32, i32) {
    %c0_i32 = arith.constant 0 : i32
    %c0_i32_0 = arith.constant 0 : i32
    %c0_i32_1 = arith.constant 0 : i32
    return %c0_i32, %c0_i32_0 : i32, i32
  }
  func.func @transform_4(%arg0: i32) -> (i32, i32) {
    %c0_i32 = arith.constant 0 : i32
    %c0_i32_0 = arith.constant 0 : i32
    %c0_i32_1 = arith.constant 0 : i32
    return %c0_i32, %c0_i32_0 : i32, i32
  }
  func.func @transform_5(%arg0: i32) -> (i32, i32) {
    %c0_i32 = arith.constant 0 : i32
    %c0_i32_0 = arith.constant 0 : i32
    %c0_i32_1 = arith.constant 0 : i32
    return %c0_i32, %c0_i32_0 : i32, i32
  }
  func.func @transform_6(%arg0: i32) -> (i32, i32) {
    %c0_i32 = arith.constant 0 : i32
    %c0_i32_0 = arith.constant 0 : i32
    %c0_i32_1 = arith.constant 0 : i32
    return %c0_i32, %c0_i32_0 : i32, i32
  }
  func.func @transform_7(%arg0: i32) -> (i32, i32) {
    %c0_i32 = arith.constant 0 : i32
    %c0_i32_0 = arith.constant 0 : i32
    %c0_i32_1 = arith.constant 0 : i32
    return %c0_i32, %c0_i32_0 : i32, i32
  }
}

</mosaic_0001>

<llo_original>
// kernel: tpu_custom_call.1
$region0: #{tpu_custom_call.1}
  #allocation0 [shape = 'u32[]', space=smem, size = 0x4, offset = 0x4, fixed_abs, tag = 'smem constant byte address 0x4 - core index']
  #allocation1 [shape = 'u32[72,128]{1,0:T(1,128)}', space=vmem, size = 0x9000, scoped, tag = 'internal scratch']
  %s0 = inlined_call_operand.hbm [shape: f32[8,32], index: 0, kind: input, shape index: {}]
  %s1 = inlined_call_operand.hbm [shape: f32[32,128], index: 1, kind: input, shape index: {}]
  %s2 = inlined_call_operand.vmem [shape: f32[1,128], index: 2, kind: input, shape index: {}]
  %s3 = inlined_call_operand.vmem [shape: f32[128,128], index: 3, kind: input, shape index: {}]
  %s4 = inlined_call_operand.vmem [shape: f32[1,128], index: 4, kind: input, shape index: {}]
  %s5 = inlined_call_operand.vmem [shape: f32[128,4], index: 5, kind: input, shape index: {}]
  %s6 = inlined_call_operand.vmem [shape: f32[1,4], index: 6, kind: input, shape index: {}]
  %s7 = inlined_call_operand.vmem [shape: f32[8,4], index: 7, kind: output, shape index: {}]
  %s8 = sld [smem:[#allocation0]]
  $region46: #{tpu_custom_call.1} parent=0
    _
  %s10 = ssub.s32 1, %s8
  %s11 = scalar_select 0, %s10, %s8
  $region1: #{tpu_custom_call.1} parent=0
    #allocation2 [shape = 'u8[4096]{0}', space=vmem, size = 0x1000, scoped, tag = 'input window, operand 0, single buffered']
    #allocation3 [shape = 's32[1]{0}', space=sflag, size = 0x4, scoped, tag = 'scoped memory for tpu_custom_call.1']
    #allocation4 [shape = 'u8[16384]{0}', space=vmem, size = 0x4000, scoped, tag = 'input window, operand 1, single buffered']
    #allocation5 [shape = 's32[1]{0}', space=sflag, size = 0x4, scoped, tag = 'scoped memory for tpu_custom_call.1']
    %12 = vsyncpa [#allocation3], 0
    %13 = vsyncpa [#allocation5], 0
    // Predicated region
    $region2: #{tpu_custom_call.1} parent=1 // pred_check
      _
    $region3: #{tpu_custom_call.1} parent=1 // pred_check_branch
      %15 = sbr.rel (0) target = $region5
    $region4: #{tpu_custom_call.1} parent=1 // pred_region
      %17 = vsyncadd [#allocation3], 0
      %s19 = sshll.u32 %s0, 4
      %s20 = int_to_ptr.hbm [resolvable:$true] %s19
      %s21 = sshll.u32 [#allocation2], 4
      %s22 = int_to_ptr.vmem [resolvable:$true] %s21
      %24 = dma.hbm_to_vmem [thread:$0]  %s20, 128, %s22, [#allocation3]
    $region5: #{tpu_custom_call.1} parent=1 // pred_fallthru
      _
    // Predicated region
    $region6: #{tpu_custom_call.1} parent=1 // pred_check
      _
    $region7: #{tpu_custom_call.1} parent=1 // pred_check_branch
      %26 = sbr.rel (0) target = $region9
    $region8: #{tpu_custom_call.1} parent=1 // pred_region
      %28 = vsyncadd [#allocation5], 0
      %s29 = sshll.u32 %s1, 4
      %s30 = int_to_ptr.hbm [resolvable:$true] %s29
      %s31 = sshll.u32 [#allocation4], 4
      %s32 = int_to_ptr.vmem [resolvable:$true] %s31
      %37 = dma.hbm_to_vmem [thread:$0]  %s30, 512, %s32, [#allocation5], 128, 128, 8
    $region9: #{tpu_custom_call.1} parent=1 // pred_fallthru
      _
    // Predicated region
    $region10: #{tpu_custom_call.1} parent=1 // pred_check
      _
    $region11: #{tpu_custom_call.1} parent=1 // pred_check_branch
      %39 = sbr.rel (0) target = $region13
    $region12: #{tpu_custom_call.1} parent=1 // pred_region
      _
    $region13: #{tpu_custom_call.1} parent=1 // pred_fallthru
      _
    // Predicated region
    $region14: #{tpu_custom_call.1} parent=1 // pred_check
      _
    $region15: #{tpu_custom_call.1} parent=1 // pred_check_branch
      %41 = sbr.rel (0) target = $region17
    $region16: #{tpu_custom_call.1} parent=1 // pred_region
      _
    $region17: #{tpu_custom_call.1} parent=1 // pred_fallthru
      _
    // Predicated region
    $region18: #{tpu_custom_call.1} parent=1 // pred_check
      _
    $region19: #{tpu_custom_call.1} parent=1 // pred_check_branch
      %43 = sbr.rel (0) target = $region21
    $region20: #{tpu_custom_call.1} parent=1 // pred_region
      _
    $region21: #{tpu_custom_call.1} parent=1 // pred_fallthru
      _
    // Predicated region
    $region22: #{tpu_custom_call.1} parent=1 // pred_check
      _
    $region23: #{tpu_custom_call.1} parent=1 // pred_check_branch
      %45 = sbr.rel (0) target = $region25
    $region24: #{tpu_custom_call.1} parent=1 // pred_region
      _
    $region25: #{tpu_custom_call.1} parent=1 // pred_fallthru
      _
    // Predicated region
    $region26: #{tpu_custom_call.1} parent=1 // pred_check
      _
    $region27: #{tpu_custom_call.1} parent=1 // pred_check_branch
      %47 = sbr.rel (0) target = $region29
    $region28: #{tpu_custom_call.1} parent=1 // pred_region
      _
    $region29: #{tpu_custom_call.1} parent=1 // pred_fallthru
      _
    // Predicated region
    $region30: #{tpu_custom_call.1} parent=1 // pred_check
      _
    $region31: #{tpu_custom_call.1} parent=1 // pred_check_branch
      %49 = sbr.rel (0) target = $region33
    $region32: #{tpu_custom_call.1} parent=1 // pred_region
      %51 = dma.done [#allocation3], 128
    $region33: #{tpu_custom_call.1} parent=1 // pred_fallthru
      _
    // Predicated region
    $region34: #{tpu_custom_call.1} parent=1 // pred_check
      _
    $region35: #{tpu_custom_call.1} parent=1 // pred_check_branch
      %53 = sbr.rel (0) target = $region37
    $region36: #{tpu_custom_call.1} parent=1 // pred_region
      %55 = dma.done [#allocation5], 512
    $region37: #{tpu_custom_call.1} parent=1 // pred_fallthru
      _
    %v56 = vld [vmem:[#allocation2] sm:$0xff]
    %v57 = vld [vmem:[#allocation4] sm:$0xff]
    %v58 = vld [vmem:[#allocation4 + $0x8] sm:$0xff]
    %v59 = vld [vmem:[#allocation4 + $0x10] sm:$0xff]
    %v60 = vld [vmem:[#allocation4 + $0x18] sm:$0xff]
    %v61 = vld [vmem:[%s2] sm:$0x1]
    %v62 = vld [vmem:[%s3] sm:$0xff]
    %v63 = vld [vmem:[%s3 + $0x8] sm:$0xff]
    %v64 = vld [vmem:[%s3 + $0x10] sm:$0xff]
    %v65 = vld [vmem:[%s3 + $0x18] sm:$0xff]
    %v66 = vld [vmem:[%s3 + $0x20] sm:$0xff]
    %v67 = vld [vmem:[%s3 + $0x28] sm:$0xff]
    %v68 = vld [vmem:[%s3 + $0x30] sm:$0xff]
    %v69 = vld [vmem:[%s3 + $0x38] sm:$0xff]
    %v70 = vld [vmem:[%s3 + $0x40] sm:$0xff]
    %v71 = vld [vmem:[%s3 + $0x48] sm:$0xff]
    %v72 = vld [vmem:[%s3 + $0x50] sm:$0xff]
    %v73 = vld [vmem:[%s3 + $0x58] sm:$0xff]
    %v74 = vld [vmem:[%s3 + $0x60] sm:$0xff]
    %v75 = vld [vmem:[%s3 + $0x68] sm:$0xff]
    %v76 = vld [vmem:[%s3 + $0x70] sm:$0xff]
    %v77 = vld [vmem:[%s3 + $0x78] sm:$0xff]
    %v78 = vld [vmem:[%s4] sm:$0x1]
    %v79 = vld [vmem:[%s5] sm:$0xff]
    %v80 = vld [vmem:[%s5 + $0x8] sm:$0xff]
    %v81 = vld [vmem:[%s5 + $0x10] sm:$0xff]
    %v82 = vld [vmem:[%s5 + $0x18] sm:$0xff]
    %v83 = vld [vmem:[%s5 + $0x20] sm:$0xff]
    %v84 = vld [vmem:[%s5 + $0x28] sm:$0xff]
    %v85 = vld [vmem:[%s5 + $0x30] sm:$0xff]
    %v86 = vld [vmem:[%s5 + $0x38] sm:$0xff]
    %v87 = vld [vmem:[%s5 + $0x40] sm:$0xff]
    %v88 = vld [vmem:[%s5 + $0x48] sm:$0xff]
    %v89 = vld [vmem:[%s5 + $0x50] sm:$0xff]
    %v90 = vld [vmem:[%s5 + $0x58] sm:$0xff]
    %v91 = vld [vmem:[%s5 + $0x60] sm:$0xff]
    %v92 = vld [vmem:[%s5 + $0x68] sm:$0xff]
    %v93 = vld [vmem:[%s5 + $0x70] sm:$0xff]
    %v94 = vld [vmem:[%s5 + $0x78] sm:$0xff]
    %v95 = vld [vmem:[%s6] sm:$0x1]
    %v97 = vperm.slane %v61, 0
    %vm99 = vcmask 261120
    %v101 = vsel %vm99, %v56, 0
    %103 = vmatpush.msra.mxu0 0.0
    %104 = vmatpush.msra.mxu0 0.0
    %105 = vmatpush.msra.mxu0 0.0
    %106 = vmatpush.msra.mxu0 0.0
    %107 = vmatpush.msra.mxu0 0.0
    %108 = vmatpush.msra.mxu0 0.0
    %109 = vmatpush.msra.mxu0 0.0
    %110 = vmatpush.msra.mxu0 0.0
    %111 = vmatpush.msra.mxu0 0.0
    %112 = vmatpush.msra.mxu0 0.0
    %113 = vmatpush.msra.mxu0 0.0
    %114 = vmatpush.msra.mxu0 0.0
    %115 = vmatpush.msra.mxu0 %v60
    %116 = vmatpush.msra.mxu0 %v59
    %117 = vmatpush.msra.mxu0 %v58
    %118 = vmatpush.msra.mxu0 %v57
    %119 = vmatmul.f32.gmra.mxu0 %v101
    %v120 = vpop.f32.mrf.mxu0
    %v121 = vadd.f32 %v97, %v120
    %122 = vdwg.mxu0
    %v123 = vmax.f32 %v121, 0.0
    %v125 = vperm.slane %v78, 0
    %127 = vmatpush.msra.mxu0 %v77
    %128 = vmatpush.msra.mxu0 %v76
    %129 = vmatpush.msra.mxu0 %v75
    %130 = vmatpush.msra.mxu0 %v74
    %131 = vmatpush.msra.mxu0 %v73
    %132 = vmatpush.msra.mxu0 %v72
    %133 = vmatpush.msra.mxu0 %v71
    %134 = vmatpush.msra.mxu0 %v70
    %135 = vmatpush.msra.mxu0 %v69
    %136 = vmatpush.msra.mxu0 %v68
    %137 = vmatpush.msra.mxu0 %v67
    %138 = vmatpush.msra.mxu0 %v66
    %139 = vmatpush.msra.mxu0 %v65
    %140 = vmatpush.msra.mxu0 %v64
    %141 = vmatpush.msra.mxu0 %v63
    %142 = vmatpush.msra.mxu0 %v62
    %143 = vmatmul.f32.gmra.mxu0 %v123
    %v144 = vpop.f32.mrf.mxu0
    %v145 = vadd.f32 %v125, %v144
    %146 = vdwg.mxu0
    %v147 = vmax.f32 %v145, 0.0
    %v149 = vperm.slane %v95, 0
    %151 = vmatpush.msra.mxu0 %v94
    %152 = vmatpush.msra.mxu0 %v93
    %153 = vmatpush.msra.mxu0 %v92
    %154 = vmatpush.msra.mxu0 %v91
    %155 = vmatpush.msra.mxu0 %v90
    %156 = vmatpush.msra.mxu0 %v89
    %157 = vmatpush.msra.mxu0 %v88
    %158 = vmatpush.msra.mxu0 %v87
    %159 = vmatpush.msra.mxu0 %v86
    %160 = vmatpush.msra.mxu0 %v85
    %161 = vmatpush.msra.mxu0 %v84
    %162 = vmatpush.msra.mxu0 %v83
    %163 = vmatpush.msra.mxu0 %v82
    %164 = vmatpush.msra.mxu0 %v81
    %165 = vmatpush.msra.mxu0 %v80
    %166 = vmatpush.msra.mxu0 %v79
    %167 = vmatmul.f32.gmra.mxu0 %v147
    %v168 = vpop.f32.mrf.mxu0
    %v169 = vadd.f32 %v149, %v168
    %170 = vdwg.mxu0
    %v171 = vlaneseq
    %v172 = vshrl.u32 %v171, 7
    %vm173 = vcmp.lt.s32.totalorder %v172, 8
    %v174 = vsel %vm173, %v169, -inf
    %vm175 = vcmask 31744
    %v176 = vsel %vm175, %v174, -inf
    %v177 = vrot.slane %v176, 4
    %v178 = vmax.f32 %v176, %v177
    %v179 = vrot.slane %v178, 2
    %v180 = vmax.f32 %v178, %v179
    %v181 = vrot.slane %v180, 1
    %v182 = vmax.f32 %v180, %v181
    %v183 = vsub.f32 %v174, %v182
    %v184 = vmul.f32 %v183, 1.442695
    %v185 = vpow.pop %v184
    %v186 = vsel %vm175, %v185, 0.0
    %v187 = vrot.slane %v186, 4
    %v188 = vadd.f32 %v186, %v187
    %v189 = vrot.slane %v188, 2
    %v190 = vadd.f32 %v188, %v189
    %v191 = vrot.slane %v190, 1
    %v192 = vadd.f32 %v190, %v191
    %v193 = vrcp.pop %v192
    %v194 = vmul.f32 %v192, %v193
    %v195 = vsub.f32 1.0, %v194
    %v196 = vmul.f32 %v193, %v195
    %v197 = vadd.f32 %v193, %v196
    %vm198 = vweird.f32 %v192
    %vm199 = vweird.f32 %v193
    %vm200 = vmor %vm198, %vm199
    %v201 = vsel %vm200, %v193, %v197
    %v202 = vand.u32 2147483647, %v192
    %vm203 = vcmp.eq.f32.partialorder %v202, 8.507059e+37
    %v204 = vand.u32 %v192, 2147483648
    %v205 = vor.u32 1.1754944e-38, %v204
    %v206 = vsel %vm203, %v205, %v201
    %v207 = vmul.f32 %v185, %v206
    %208 = vst.msk [vmem:[%s7] sm:$0xff] %vm175, %v207
    // Predicated region
    $region38: #{tpu_custom_call.1} parent=1 // pred_check
      _
    $region39: #{tpu_custom_call.1} parent=1 // pred_check_branch
      %210 = sbr.rel (0) target = $region41
    $region40: #{tpu_custom_call.1} parent=1 // pred_region
      _
    $region41: #{tpu_custom_call.1} parent=1 // pred_fallthru
      _
    // Predicated region
    $region42: #{tpu_custom_call.1} parent=1 // pred_check
      _
    $region43: #{tpu_custom_call.1} parent=1 // pred_check_branch
      %212 = sbr.rel (0) target = $region45
    $region44: #{tpu_custom_call.1} parent=1 // pred_region
      _
    $region45: #{tpu_custom_call.1} parent=1 // pred_fallthru
      _
    %213 = vsyncpa [#allocation3], 1
    %214 = vsyncpa [#allocation5], 1

</llo_original>
